<compile_context>
chip_gen: v6e
topology: v6e:2x2x1
jax: 0.10.0
libtpu: 0.0.40
codegen_flags: <defaults>
</compile_context>

<pallas_src>
import functools

import jax
import jax.numpy as jnp
from jax.experimental import pallas as pl
from jax.experimental.pallas import tpu as pltpu

_LANES = 128
_SUBLANES = 8
_CHUNK = _SUBLANES * _LANES  # 1024 elements


def _focal_math(x, t, gamma, alpha, approx):
    """Core focal-loss math in float32 (x, t already cast to f32)."""
    # One exp feeds both the CE log1p term and the numerically stable sigmoid.
    e = jnp.exp(-jnp.abs(x))                               # exp(-|x|)
    ce = jnp.maximum(x, 0.0) - x * t + jnp.log1p(e)        # sigmoid CE w/ logits

    one_plus_e = 1.0 + e
    if approx:
        inv = pl.reciprocal(one_plus_e, approx=True)       # EUP vrcp, ~1e-3 rel
    else:
        inv = 1.0 / one_plus_e                             # exact VALU divide
    p = jnp.where(x >= 0.0, inv, e * inv)                  # sigmoid(x)

    loss = ce
    if alpha is not None:
        a = float(alpha)
        # t*a + (1-t)*(1-a) == (1-a) + t*(2a-1); constants folded at trace time.
        loss = (jnp.float32(1.0 - a) + t * jnp.float32(2.0 * a - 1.0)) * loss
    if gamma:  # matches `if self._gamma:` (0 / 0.0 / None -> skip)
        # 1 - p_t == 1 - (t*p + (1-t)*(1-p)) == t + p - 2*t*p
        one_minus_pt = t + p - 2.0 * (t * p)
        g = float(gamma)
        if g == int(g) and 1 <= int(g) <= 8:
            mod = one_minus_pt
            for _ in range(int(g) - 1):                    # gamma=2 -> one vmul
                mod = mod * one_minus_pt
        else:
            mod = jnp.power(one_minus_pt, jnp.float32(g))
        loss = mod * loss
    return loss


def _kernel_nw(gamma, alpha, approx, x_ref, t_ref, out_ref):
    x = x_ref[...].astype(jnp.float32)
    t = t_ref[...].astype(jnp.float32)
    out_ref[...] = _focal_math(x, t, gamma, alpha, approx).astype(out_ref.dtype)


def _kernel_w(gamma, alpha, approx, x_ref, t_ref, w_ref, out_ref):
    x = x_ref[...].astype(jnp.float32)
    t = t_ref[...].astype(jnp.float32)
    loss = _focal_math(x, t, gamma, alpha, approx) * w_ref[...].astype(jnp.float32)
    out_ref[...] = loss.astype(out_ref.dtype)


def _kernel_sw(gamma, alpha, approx, x_ref, t_ref, w_ref, out_ref):
    # w_ref is a (1,)-f32 scalar living in SMEM (never broadcast in HBM).
    x = x_ref[...].astype(jnp.float32)
    t = t_ref[...].astype(jnp.float32)
    loss = _focal_math(x, t, gamma, alpha, approx) * w_ref[0]
    out_ref[...] = loss.astype(out_ref.dtype)


def _focal_ref_jnp(logits, labels, weights=None, gamma=2.0, alpha=0.5):
    """Pure-jnp reference; also used as the (<1024-element) tail epilogue."""
    ce = jnp.maximum(logits, 0.0) - logits * labels + jnp.log1p(
        jnp.exp(-jnp.abs(logits)))
    p = jax.nn.sigmoid(logits)
    p_t = labels * p + (1.0 - labels) * (1.0 - p)
    mod = jnp.power(1.0 - p_t, gamma) if gamma else 1.0
    aw = labels * alpha + (1.0 - labels) * (1.0 - alpha) if alpha is not None else 1.0
    out = mod * aw * ce
    if weights is not None:
        out = out * weights
    return out


def _auto_tile_rows(stream_itemsizes, budget_bytes=24 << 20):
    """Largest row tile whose double-buffered footprint fits the VMEM budget."""
    per_row = 2 * _LANES * sum(stream_itemsizes)   # 2 pipeline buffers / stream
    for tr in (4096, 2048, 1024, 512, 256):
        if tr * per_row <= budget_bytes:
            return tr
    return 128


def sigmoid_focal_loss(prediction_tensor, target_tensor, weights=None,
                       gamma=2.0, alpha=0.5, tile_rows=None,
                       approx_sigmoid=True):
    """Elementwise sigmoid focal loss; same shape/dtype as prediction_tensor."""
    assert not isinstance(gamma, jax.Array) and not isinstance(alpha, jax.Array), (
        "gamma/alpha must be Python scalars (or None), not traced values")

    orig_shape = tuple(prediction_tensor.shape)
    out_dtype = prediction_tensor.dtype
    n = int(prediction_tensor.size)

    # ---- classify weights: None / scalar (SMEM) / full-shape (streamed) -----
    w_mode, w_full, w_scalar = "none", None, None
    if weights is not None:
        w_arr = jnp.asarray(weights)
        if w_arr.size == 1:
            w_mode = "scalar"
            w_scalar = jnp.reshape(w_arr.astype(jnp.float32), (1,))
        elif tuple(w_arr.shape) == orig_shape:
            w_mode, w_full = "full", w_arr
        else:
            # TODO(synk): stream low-rank (e.g. per-channel) weights from SMEM
            # instead of materializing a full HBM broadcast.
            w_mode, w_full = "full", jnp.broadcast_to(w_arr, orig_shape)

    n_main = (n // _CHUNK) * _CHUNK          # 1024-aligned prefix -> kernel
    n_tail = n - n_main                      # < 1024 elements     -> jnp epilogue

    x_flat = jnp.reshape(prediction_tensor, (-1,))
    t_flat = jnp.reshape(target_tensor, (-1,))
    w_flat = jnp.reshape(w_full, (-1,)) if w_mode == "full" else None

    out_parts = []

    if n_main:
        rows = n_main // _LANES              # always a multiple of 8

        def _main(flat):
            m = flat if n_tail == 0 else flat[:n_main]
            return jnp.reshape(m, (rows, _LANES))

        ops = [_main(x_flat), _main(t_flat)]
        if w_mode == "full":
            ops.append(_main(w_flat))
            kernel = functools.partial(_kernel_w, gamma, alpha, approx_sigmoid)
        elif w_mode == "scalar":
            ops.append(w_scalar)
            kernel = functools.partial(_kernel_sw, gamma, alpha, approx_sigmoid)
        else:
            # 3-stream kernel: never materialize / stream a ones tensor.
            kernel = functools.partial(_kernel_nw, gamma, alpha, approx_sigmoid)

        # Itemsizes of every VMEM stream (SMEM scalar excluded) incl. output.
        streamed = ops[:3] if w_mode == "full" else ops[:2]
        itemsizes = [o.dtype.itemsize for o in streamed] + [jnp.dtype(out_dtype).itemsize]
        # bf16/fp16 pack two rows per sublane -> keep row tiles multiples of 16.
        row_align = 16 if any(s < 4 for s in itemsizes) else _SUBLANES

        tr = _auto_tile_rows(itemsizes) if tile_rows is None else int(tile_rows)
        tr = min(tr, rows)
        if tr >= row_align:
            tr = (tr // row_align) * row_align
        else:
            tr = max(_SUBLANES, (tr // _SUBLANES) * _SUBLANES)

        grid = (pl.cdiv(rows, tr),)
        block = pl.BlockSpec((tr, _LANES), lambda i: (i, 0))
        in_specs = [block, block]
        if w_mode == "full":
            in_specs.append(block)
        elif w_mode == "scalar":
            in_specs.append(pl.BlockSpec(memory_space=pltpu.MemorySpace.SMEM))

        out_main = pl.pallas_call(
            kernel,
            out_shape=jax.ShapeDtypeStruct((rows, _LANES), out_dtype),
            grid_spec=pltpu.PrefetchScalarGridSpec(
                num_scalar_prefetch=0,
                grid=grid,
                in_specs=in_specs,
                out_specs=block,
            ),
            compiler_params=pltpu.CompilerParams(
                # "parallel" shards the 1-D grid across both TensorCores on v7x
                # and is a no-op on single-TC v5e/v6e.
                dimension_semantics=("parallel",),
                # Covers v5e's 16 MiB default scoped VMEM at the 4096-row tile;
                # well under v7x's 64 MiB physical VMEM.
                vmem_limit_bytes=32 << 20,
            ),
        )(*ops)
        out_parts.append(jnp.reshape(out_main, (-1,)))

    if n_tail:
        xt = x_flat[n_main:].astype(jnp.float32)
        tt = t_flat[n_main:].astype(jnp.float32)
        wt = w_flat[n_main:].astype(jnp.float32) if w_mode == "full" else None
        tail = _focal_ref_jnp(xt, tt, wt, gamma, alpha)
        if w_mode == "scalar":
            tail = tail * w_scalar[0]
        out_parts.append(tail.astype(out_dtype))

    out_flat = out_parts[0] if len(out_parts) == 1 else jnp.concatenate(out_parts)
    return jnp.reshape(out_flat, orig_shape)


if __name__ == "__main__":
    key = jax.random.PRNGKey(0)
    k1, k2, k3 = jax.random.split(key, 3)

    # approx_sigmoid=True uses the EUP vrcp (~1e-3 rel err in the modulating
    # factor) -> loosened tolerances; fine for a training loss.
    RTOL, ATOL = 1e-2, 1e-3

    # 1) NCHW detection-head shape, full-shape weights (aligned: 2048 elems).
    shape = (2, 4, 16, 16)
    logits = jax.random.normal(k1, shape, dtype=jnp.float32) * 3.0
    labels = (jax.random.uniform(k2, shape) > 0.5).astype(jnp.float32)
    weights = jax.random.uniform(k3, shape, dtype=jnp.float32)

    out = jax.block_until_ready(sigmoid_focal_loss(logits, labels, weights))
    ref = _focal_ref_jnp(logits, labels, weights)
    assert out.shape == shape and out.dtype == logits.dtype
    assert jnp.allclose(out, ref, rtol=RTOL, atol=ATOL), "mismatch (weights path)"

    # 1b) exact-divide path matches tightly.
    out_exact = jax.block_until_ready(
        sigmoid_focal_loss(logits, labels, weights, approx_sigmoid=False))
    assert jnp.allclose(out_exact, ref, atol=1e-5, rtol=1e-5), "mismatch (exact path)"

    # 2) weights=None: 3-stream kernel (no ones tensor).
    out_nw = jax.block_until_ready(sigmoid_focal_loss(logits, labels, None))
    assert jnp.allclose(out_nw, _focal_ref_jnp(logits, labels, None),
                        rtol=RTOL, atol=ATOL), "mismatch (no-weights path)"

    # 3) scalar weights: passed through SMEM, never broadcast in HBM.
    out_sw = jax.block_until_ready(
        sigmoid_focal_loss(logits, labels, jnp.float32(0.25)))
    assert jnp.allclose(out_sw, _focal_ref_jnp(logits, labels, 0.25),
                        rtol=RTOL, atol=ATOL), "mismatch (scalar-weights path)"

    # 4) unaligned size: 1024-aligned prefix in the kernel + jnp tail epilogue
    #    (3315 = 3*1024 + 243), no full-tensor pad/slice.
    shape4 = (3, 5, 17, 13)
    l4 = jax.random.normal(k1, shape4, dtype=jnp.float32) * 2.0
    t4 = (jax.random.uniform(k2, shape4) > 0.5).astype(jnp.float32)
    w4 = jax.random.uniform(k3, shape4, dtype=jnp.float32)
    out4 = jax.block_until_ready(sigmoid_focal_loss(l4, t4, w4))
    assert jnp.allclose(out4, _focal_ref_jnp(l4, t4, w4),
                        rtol=RTOL, atol=ATOL), "mismatch (prefix+tail path)"

    # 5) tiny (<1024 elements) input: pure-jnp fallback path, exact.
    shape5 = (2, 3, 7, 5)
    l5 = jax.random.normal(k1, shape5, dtype=jnp.float32)
    t5 = (jax.random.uniform(k2, shape5) > 0.5).astype(jnp.float32)
    out5 = jax.block_until_ready(sigmoid_focal_loss(l5, t5, None))
    assert jnp.allclose(out5, _focal_ref_jnp(l5, t5, None),
                        atol=1e-5, rtol=1e-5), "mismatch (tiny fallback path)"

    # 6) ragged last grid block: rows=24, tile_rows=16 -> grid=(2,).
    shape6 = (2, 4, 16, 24)
    l6 = jax.random.normal(k1, shape6, dtype=jnp.float32)
    t6 = (jax.random.uniform(k2, shape6) > 0.5).astype(jnp.float32)
    w6 = jax.random.uniform(k3, shape6, dtype=jnp.float32)
    out6 = jax.block_until_ready(sigmoid_focal_loss(l6, t6, w6, tile_rows=16))
    assert jnp.allclose(out6, _focal_ref_jnp(l6, t6, w6),
                        rtol=RTOL, atol=ATOL), "mismatch (ragged grid path)"

    # 7) bf16 logits with f32 labels: native-dtype streaming (no wrapper cast),
    #    16-row tile alignment for packed sublanes.
    l7 = (jax.random.normal(k1, shape, dtype=jnp.float32) * 3.0).astype(jnp.bfloat16)
    out7 = jax.block_until_ready(sigmoid_focal_loss(l7, labels, None))
    ref7 = _focal_ref_jnp(l7.astype(jnp.float32), labels, None)
    assert out7.dtype == jnp.bfloat16
    assert jnp.allclose(out7.astype(jnp.float32), ref7,
                        rtol=3e-2, atol=3e-2), "mismatch (bf16 path)"

    print("KERNEL_OK")
</pallas_src>

<mosaic_0001>
module attributes {stable_mosaic.version = 11 : i64} {
  func.func @_kernel_w(%arg0: i32, %arg1: memref<16x128xf32, #tpu.memory_space<vmem>>, %arg2: memref<16x128xf32, #tpu.memory_space<vmem>>, %arg3: memref<16x128xf32, #tpu.memory_space<vmem>>, %arg4: memref<16x128xf32, #tpu.memory_space<vmem>>) attributes {dimension_semantics = [#tpu.dimension_semantics<parallel>], iteration_bounds = array<i64: 1>, scalar_prefetch = 0 : i64, scratch_operands = 0 : i64, tpu.core_type = #tpu.core_type<tc>, window_params = [{transform_indices = @transform_0, window_bounds = array<i64: 16, 128>}, {transform_indices = @transform_1, window_bounds = array<i64: 16, 128>}, {transform_indices = @transform_2, window_bounds = array<i64: 16, 128>}, {transform_indices = @transform_3, window_bounds = array<i64: 16, 128>}]} {
    %c0 = arith.constant 0 : index
    %c0_0 = arith.constant 0 : index
    %0 = vector.load %arg1[%c0, %c0_0] : memref<16x128xf32, #tpu.memory_space<vmem>>, vector<16x128xf32>
    %c0_1 = arith.constant 0 : index
    %c0_2 = arith.constant 0 : index
    %1 = vector.load %arg2[%c0_1, %c0_2] : memref<16x128xf32, #tpu.memory_space<vmem>>, vector<16x128xf32>
    %2 = math.absf %0 : vector<16x128xf32>
    %cst = arith.constant 0.000000e+00 : f32
    %3 = vector.broadcast %cst : f32 to vector<16x128xf32>
    %4 = arith.subf %3, %2 : vector<16x128xf32>
    %5 = math.exp %4 : vector<16x128xf32>
    %cst_3 = arith.constant 0.000000e+00 : f32
    %6 = vector.broadcast %cst_3 : f32 to vector<16x128xf32>
    %7 = arith.maximumf %0, %6 : vector<16x128xf32>
    %8 = arith.mulf %0, %1 : vector<16x128xf32>
    %9 = arith.subf %7, %8 : vector<16x128xf32>
    %10 = math.log1p %5 : vector<16x128xf32>
    %11 = arith.addf %9, %10 : vector<16x128xf32>
    %cst_4 = arith.constant 1.000000e+00 : f32
    %12 = vector.broadcast %cst_4 : f32 to vector<16x128xf32>
    %13 = arith.addf %12, %5 : vector<16x128xf32>
    %14 = tpu.reciprocal %13 {approx = true} : vector<16x128xf32> -> vector<16x128xf32>
    %cst_5 = arith.constant 0.000000e+00 : f32
    %15 = vector.broadcast %cst_5 : f32 to vector<16x128xf32>
    %16 = arith.cmpf oge, %0, %15 : vector<16x128xf32>
    %17 = arith.mulf %5, %14 : vector<16x128xf32>
    %18 = arith.select %16, %14, %17 : vector<16x128xi1>, vector<16x128xf32>
    %cst_6 = arith.constant 0.000000e+00 : f32
    %19 = vector.broadcast %cst_6 : f32 to vector<16x128xf32>
    %20 = arith.mulf %1, %19 : vector<16x128xf32>
    %cst_7 = arith.constant 5.000000e-01 : f32
    %21 = vector.broadcast %cst_7 : f32 to vector<16x128xf32>
    %22 = arith.addf %21, %20 : vector<16x128xf32>
    %23 = arith.mulf %22, %11 : vector<16x128xf32>
    %24 = arith.addf %1, %18 : vector<16x128xf32>
    %25 = arith.mulf %1, %18 : vector<16x128xf32>
    %cst_8 = arith.constant 2.000000e+00 : f32
    %26 = vector.broadcast %cst_8 : f32 to vector<16x128xf32>
    %27 = arith.mulf %26, %25 : vector<16x128xf32>
    %28 = arith.subf %24, %27 : vector<16x128xf32>
    %29 = arith.mulf %28, %28 : vector<16x128xf32>
    %30 = arith.mulf %29, %23 : vector<16x128xf32>
    %c0_9 = arith.constant 0 : index
    %c0_10 = arith.constant 0 : index
    %31 = vector.load %arg3[%c0_9, %c0_10] : memref<16x128xf32, #tpu.memory_space<vmem>>, vector<16x128xf32>
    %32 = arith.mulf %30, %31 : vector<16x128xf32>
    %c0_11 = arith.constant 0 : index
    %c0_12 = arith.constant 0 : index
    %33 = vector.load %arg4[%c0_11, %c0_12] : memref<16x128xf32, #tpu.memory_space<vmem>>, vector<16x128xf32>
    tpu.vector_store %arg4[%c0_11, %c0_12], %32 {strides = array<i32>} : memref<16x128xf32, #tpu.memory_space<vmem>>, vector<16x128xf32>,
    return
  }
  func.func @transform_0(%arg0: i32) -> (i32, i32) {
    %c0_i32 = arith.constant 0 : i32
    %c0_i32_0 = arith.constant 0 : i32
    return %arg0, %c0_i32 : i32, i32
  }
  func.func @transform_1(%arg0: i32) -> (i32, i32) {
    %c0_i32 = arith.constant 0 : i32
    %c0_i32_0 = arith.constant 0 : i32
    return %arg0, %c0_i32 : i32, i32
  }
  func.func @transform_2(%arg0: i32) -> (i32, i32) {
    %c0_i32 = arith.constant 0 : i32
    %c0_i32_0 = arith.constant 0 : i32
    return %arg0, %c0_i32 : i32, i32
  }
  func.func @transform_3(%arg0: i32) -> (i32, i32) {
    %c0_i32 = arith.constant 0 : i32
    %c0_i32_0 = arith.constant 0 : i32
    return %arg0, %c0_i32 : i32, i32
  }
}

</mosaic_0001>

<llo_original>
// kernel: tpu_custom_call.1
$region0: #{tpu_custom_call.1}
  #allocation0 [shape = 'u32[]', space=smem, size = 0x4, offset = 0x4, fixed_abs, tag = 'smem constant byte address 0x4 - core index']
  #allocation1 [shape = 'u32[144,128]{1,0:T(1,128)}', space=vmem, size = 0x12000, scoped, tag = 'internal scratch']
  %s0 = inlined_call_operand.hbm [shape: f32[16,128], index: 0, kind: input, shape index: {}]
  %s1 = inlined_call_operand.hbm [shape: f32[16,128], index: 1, kind: input, shape index: {}]
  %s2 = inlined_call_operand.hbm [shape: f32[16,128], index: 2, kind: input, shape index: {}]
  %s3 = inlined_call_operand.hbm [shape: f32[16,128], index: 3, kind: output, shape index: {}]
  %s4 = sld [smem:[#allocation0]]
  $region34: #{tpu_custom_call.1} parent=0
    _
  %s6 = ssub.s32 1, %s4
  %s7 = scalar_select 0, %s6, %s4
  $region1: #{tpu_custom_call.1} parent=0
    #allocation2 [shape = 'u8[8192]{0}', space=vmem, size = 0x2000, scoped, tag = 'input window, operand 0, single buffered']
    #allocation3 [shape = 's32[1]{0}', space=sflag, size = 0x4, scoped, tag = 'scoped memory for tpu_custom_call.1']
    #allocation4 [shape = 's32[1]{0}', space=sflag, size = 0x4, scoped, tag = 'scoped memory for tpu_custom_call.1']
    #allocation5 [shape = 'u8[8192]{0}', space=vmem, size = 0x2000, scoped, tag = 'input window, operand 1, single buffered']
    #allocation6 [shape = 's32[1]{0}', space=sflag, size = 0x4, scoped, tag = 'scoped memory for tpu_custom_call.1']
    #allocation7 [shape = 'u8[8192]{0}', space=vmem, size = 0x2000, scoped, tag = 'input window, operand 2, single buffered']
    #allocation8 [shape = 'u8[8192]{0}', space=vmem, size = 0x2000, scoped, tag = 'output window, operand 0, single buffered']
    %8 = vsyncpa [#allocation3], 0
    %9 = vsyncpa [#allocation6], 0
    %10 = vsyncpa [#allocation4], 0
    // Predicated region
    $region2: #{tpu_custom_call.1} parent=1 // pred_check
      _
    $region3: #{tpu_custom_call.1} parent=1 // pred_check_branch
      %12 = sbr.rel (0) target = $region5
    $region4: #{tpu_custom_call.1} parent=1 // pred_region
      %s14 = ssub.s32 256, 256
      %15 = vsyncadd [#allocation3], %s14
      %s16 = sshll.u32 [#allocation2], 4
      %s17 = int_to_ptr.vmem [resolvable:$true] %s16
      %22 = dma.hbm_to_vmem [thread:$0]  %s0, 256, %s17, [#allocation3], 128, 128, 8
    $region5: #{tpu_custom_call.1} parent=1 // pred_fallthru
      _
    // Predicated region
    $region6: #{tpu_custom_call.1} parent=1 // pred_check
      _
    $region7: #{tpu_custom_call.1} parent=1 // pred_check_branch
      %24 = sbr.rel (0) target = $region9
    $region8: #{tpu_custom_call.1} parent=1 // pred_region
      %s26 = ssub.s32 256, 256
      %27 = vsyncadd [#allocation6], %s26
      %s28 = sshll.u32 [#allocation5], 4
      %s29 = int_to_ptr.vmem [resolvable:$true] %s28
      %34 = dma.hbm_to_vmem [thread:$0]  %s1, 256, %s29, [#allocation6], 128, 128, 8
    $region9: #{tpu_custom_call.1} parent=1 // pred_fallthru
      _
    // Predicated region
    $region10: #{tpu_custom_call.1} parent=1 // pred_check
      _
    $region11: #{tpu_custom_call.1} parent=1 // pred_check_branch
      %36 = sbr.rel (0) target = $region13
    $region12: #{tpu_custom_call.1} parent=1 // pred_region
      %s38 = ssub.s32 256, 256
      %39 = vsyncadd [#allocation6], %s38
      %s40 = sshll.u32 [#allocation7], 4
      %s41 = int_to_ptr.vmem [resolvable:$true] %s40
      %46 = dma.hbm_to_vmem [thread:$0]  %s2, 256, %s41, [#allocation6], 128, 128, 8
    $region13: #{tpu_custom_call.1} parent=1 // pred_fallthru
      _
    // Predicated region
    $region14: #{tpu_custom_call.1} parent=1 // pred_check
      _
    $region15: #{tpu_custom_call.1} parent=1 // pred_check_branch
      %48 = sbr.rel (0) target = $region17
    $region16: #{tpu_custom_call.1} parent=1 // pred_region
      %49 = dma.done [#allocation3], 256
    $region17: #{tpu_custom_call.1} parent=1 // pred_fallthru
      _
    // Predicated region
    $region18: #{tpu_custom_call.1} parent=1 // pred_check
      _
    $region19: #{tpu_custom_call.1} parent=1 // pred_check_branch
      %51 = sbr.rel (0) target = $region21
    $region20: #{tpu_custom_call.1} parent=1 // pred_region
      %52 = dma.done [#allocation6], 256
    $region21: #{tpu_custom_call.1} parent=1 // pred_fallthru
      _
    // Predicated region
    $region22: #{tpu_custom_call.1} parent=1 // pred_check
      _
    $region23: #{tpu_custom_call.1} parent=1 // pred_check_branch
      %54 = sbr.rel (0) target = $region25
    $region24: #{tpu_custom_call.1} parent=1 // pred_region
      %55 = dma.done [#allocation6], 256
    $region25: #{tpu_custom_call.1} parent=1 // pred_fallthru
      _
    %v56 = vld [vmem:[#allocation2] sm:$0xff]
    %v57 = vld [vmem:[#allocation2 + $0x8] sm:$0xff]
    %v58 = vld [vmem:[#allocation5] sm:$0xff]
    %v59 = vld [vmem:[#allocation5 + $0x8] sm:$0xff]
    %v60 = vand.u32 2147483647, %v56
    %v61 = vand.u32 2147483647, %v57
    %v62 = vsub.f32 0.0, %v60
    %v63 = vsub.f32 0.0, %v61
    %v64 = vmul.f32 %v62, 1.442695
    %v65 = vpow.pop %v64
    %v66 = vmul.f32 %v63, 1.442695
    %v67 = vpow.pop %v66
    %v68 = vmax.f32 %v56, 0.0
    %v69 = vmax.f32 %v57, 0.0
    %v70 = vmul.f32 %v56, %v58
    %v71 = vmul.f32 %v57, %v59
    %v72 = vsub.f32 %v68, %v70
    %v73 = vsub.f32 %v69, %v71
    %v74 = vadd.f32 %v65, 1.0
    %v75 = vlog2.pop %v74
    %v76 = vmul.f32 %v75, 0.6931472
    %v77 = vmul.f32 -0.5, %v65
    %v78 = vadd.f32 %v77, 1.0
    %v79 = vmul.f32 %v78, %v65
    %v80 = vand.u32 2147483647, %v65
    %vm81 = vcmp.lt.f32.partialorder %v80, 0.0004427343
    %v82 = vsel %vm81, %v79, %v76
    %v83 = vadd.f32 %v67, 1.0
    %v84 = vlog2.pop %v83
    %v85 = vmul.f32 %v84, 0.6931472
    %v86 = vmul.f32 -0.5, %v67
    %v87 = vadd.f32 %v86, 1.0
    %v88 = vmul.f32 %v87, %v67
    %v89 = vand.u32 2147483647, %v67
    %vm90 = vcmp.lt.f32.partialorder %v89, 0.0004427343
    %v91 = vsel %vm90, %v88, %v85
    %v92 = vadd.f32 %v72, %v82
    %v93 = vadd.f32 %v73, %v91
    %v94 = vadd.f32 %v65, 1.0
    %v95 = vadd.f32 %v67, 1.0
    %v96 = vrcp.pop %v94
    %v97 = vrcp.pop %v95
    %vm98 = vcmp.ge.f32.partialorder %v56, 0.0
    %vm99 = vcmp.ge.f32.partialorder %v57, 0.0
    %v100 = vmul.f32 %v65, %v96
    %v101 = vmul.f32 %v67, %v97
    %v102 = vsel %vm98, %v96, %v100
    %v103 = vsel %vm99, %v97, %v101
    %v104 = vmul.f32 %v58, 0.0
    %v105 = vmul.f32 %v59, 0.0
    %v106 = vadd.f32 %v104, 0.5
    %v107 = vadd.f32 %v105, 0.5
    %v108 = vmul.f32 %v106, %v92
    %v109 = vmul.f32 %v107, %v93
    %v110 = vadd.f32 %v58, %v102
    %v111 = vadd.f32 %v59, %v103
    %v112 = vmul.f32 %v58, %v102
    %v113 = vmul.f32 %v59, %v103
    %v114 = vmul.f32 %v112, 2.0
    %v115 = vmul.f32 %v113, 2.0
    %v116 = vsub.f32 %v110, %v114
    %v117 = vsub.f32 %v111, %v115
    %v118 = vmul.f32 %v116, %v116
    %v119 = vmul.f32 %v117, %v117
    %v120 = vmul.f32 %v118, %v108
    %v121 = vmul.f32 %v119, %v109
    %v122 = vld [vmem:[#allocation7] sm:$0xff]
    %v123 = vld [vmem:[#allocation7 + $0x8] sm:$0xff]
    %v124 = vmul.f32 %v120, %v122
    %v125 = vmul.f32 %v121, %v123
    %126 = vst [vmem:[#allocation8] sm:$0xff] %v124
    %127 = vst [vmem:[#allocation8 + $0x8] sm:$0xff] %v125
    // Predicated region
    $region26: #{tpu_custom_call.1} parent=1 // pred_check
      _
    $region27: #{tpu_custom_call.1} parent=1 // pred_check_branch
      %129 = sbr.rel (0) target = $region29
    $region28: #{tpu_custom_call.1} parent=1 // pred_region
      %s131 = ssub.s32 256, 256
      %132 = vsyncadd [#allocation4], %s131
      %s133 = sshll.u32 [#allocation8], 4
      %s134 = int_to_ptr.vmem [resolvable:$true] %s133
      %139 = dma.vmem_to_hbm [thread:$0]  %s134, 256, %s3, [#allocation4], 128, 128, 8
    $region29: #{tpu_custom_call.1} parent=1 // pred_fallthru
      _
    // Predicated region
    $region30: #{tpu_custom_call.1} parent=1 // pred_check
      _
    $region31: #{tpu_custom_call.1} parent=1 // pred_check_branch
      %141 = sbr.rel (0) target = $region33
    $region32: #{tpu_custom_call.1} parent=1 // pred_region
      %142 = dma.done [#allocation4], 256
    $region33: #{tpu_custom_call.1} parent=1 // pred_fallthru
      _
    %143 = vsyncpa [#allocation3], 1
    %144 = vsyncpa [#allocation6], 1
    %145 = vsyncpa [#allocation4], 1

</llo_original>
